<compile_context>
chip_gen: v7x
topology: tpu7x:2x2x1
jax: 0.10.0
libtpu: 0.0.40
codegen_flags: <defaults>
</compile_context>

<pallas_src>
import functools

import jax
import jax.numpy as jnp
from jax.experimental import pallas as pl
from jax.experimental.pallas import tpu as pltpu

EPS = 1e-5
_LANE_CHUNK = 512   # lane-chunk width for the streaming f32 pooling sum


# --------------------------------------------------------------------------
# parameters
# --------------------------------------------------------------------------
def make_params(C, key):
    """Deterministic synthetic parameters matching scSEblock(out=C), packed
    into 6 arrays: (w1t, q1, a1, w2t, q2, a2)."""
    assert C % 8 == 0, "C must be divisible by 8 (GroupNorm(out//8, out//2))"
    C2 = C // 2
    G1, G2 = C // 8, C // 4
    gs1, gs2 = C2 // G1, C // G2

    ks = jax.random.split(key, 8)
    f32 = jnp.float32

    # conv1: full 3x3 weight (faithful to the module); on a 1x1 zero-padded input
    # only the center tap contributes -> extract it (glue, not compute).
    w1_full = 0.1 * jax.random.normal(ks[0], (C2, C, 3, 3), f32)
    w1t = w1_full[:, :, 1, 1].T                                  # (C, C2)
    b1 = 0.1 * jax.random.normal(ks[1], (C2,), f32)
    g1 = 1.0 + 0.1 * jax.random.normal(ks[2], (C2,), f32)
    be1 = 0.1 * jax.random.normal(ks[3], (C2,), f32)
    q1 = jnp.stack([b1, g1, be1], axis=0)                        # (3, C2)

    w2 = 0.1 * jax.random.normal(ks[4], (C, C2), f32)
    w2t = w2.T                                                   # (C2, C)
    b2 = 0.1 * jax.random.normal(ks[5], (C,), f32)
    g2 = 1.0 + 0.1 * jax.random.normal(ks[6], (C,), f32)
    be2 = 0.1 * jax.random.normal(ks[7], (C,), f32)
    q2 = jnp.stack([b2, g2, be2], axis=0)                        # (3, C)

    # Group-average matrices: (y @ a)[t, j] = mean of y over group(j).
    idx1 = jnp.arange(C2)
    a1 = ((idx1[:, None] // gs1) == (idx1[None, :] // gs1)).astype(f32) / gs1
    idx2 = jnp.arange(C)
    a2 = ((idx2[:, None] // gs2) == (idx2[None, :] // gs2)).astype(f32) / gs2

    return (w1t, q1, a1, w2t, q2, a2)


# --------------------------------------------------------------------------
# in-kernel squeeze/excite MLP (shared by both paths)
# --------------------------------------------------------------------------
def _squeeze_excite_mlp(pooled, w1t, q1, a1, w2t, q2, a2):
    """pooled: (TN, C) f32 -> sigmoid gate (TN, C) f32."""
    # conv1 (center tap of the 3x3 on a 1x1 input) + bias
    y = jnp.dot(pooled, w1t, preferred_element_type=jnp.float32) + q1[0:1, :]
    # GroupNorm(C//8): robust two-pass variance via group-average matmul
    m = jnp.dot(y, a1, preferred_element_type=jnp.float32)
    d = y - m
    v = jnp.dot(d * d, a1, preferred_element_type=jnp.float32)
    y = d * jax.lax.rsqrt(v + EPS) * q1[1:2, :] + q1[2:3, :]
    # hardswish
    y = y * jnp.clip(y + 3.0, 0.0, 6.0) * (1.0 / 6.0)
    # conv2 (1x1) + bias
    z = jnp.dot(y, w2t, preferred_element_type=jnp.float32) + q2[0:1, :]
    # GroupNorm(C//4)
    m2 = jnp.dot(z, a2, preferred_element_type=jnp.float32)
    d2 = z - m2
    v2 = jnp.dot(d2 * d2, a2, preferred_element_type=jnp.float32)
    z = d2 * jax.lax.rsqrt(v2 + EPS) * q2[1:2, :] + q2[2:3, :]
    return jax.nn.sigmoid(z)


# --------------------------------------------------------------------------
# kernels
# --------------------------------------------------------------------------
def _pooled_sum_f32(x_ref):
    """Streaming f32 spatial sum over the lane axis of a (TN, C, HW) block
    without materializing a full-slab f32 temp."""
    _, _, HW = x_ref.shape
    n_full = HW // _LANE_CHUNK
    acc = jnp.zeros(x_ref.shape[:2], jnp.float32)

    if n_full > 0:
        def body(i, a):
            start = pl.multiple_of(i * _LANE_CHUNK, _LANE_CHUNK)
            chunk = x_ref[:, :, pl.ds(start, _LANE_CHUNK)]
            return a + jnp.sum(chunk.astype(jnp.float32), axis=-1)
        acc = jax.lax.fori_loop(0, n_full, body, acc, unroll=bool(n_full <= 8))

    rem = HW - n_full * _LANE_CHUNK
    if rem > 0:
        tail = x_ref[...] if n_full == 0 else x_ref[:, :, n_full * _LANE_CHUNK:]
        acc = acc + jnp.sum(tail.astype(jnp.float32), axis=-1)
    return acc


def _scse_fused_kernel(x_ref, w1t_ref, q1_ref, a1_ref, w2t_ref, q2_ref, a2_ref,
                       o_ref):
    """Single pass: streaming pool + MLP + native-dtype rescale on a (TN, C, HW) slab."""
    hw = x_ref.shape[-1]
    pooled = _pooled_sum_f32(x_ref) * (1.0 / float(hw))                 # (TN, C) f32
    scale = _squeeze_excite_mlp(pooled, w1t_ref[...], q1_ref[...], a1_ref[...],
                                w2t_ref[...], q2_ref[...], a2_ref[...])
    g = scale.astype(o_ref.dtype)                                       # gate in [0,1]
    o_ref[...] = x_ref[...] * g[:, :, None]


def _scse_reduce_kernel(x_ref, w1t_ref, q1_ref, a1_ref, w2t_ref, q2_ref, a2_ref,
                        gate_ref, acc_ref, *, hw, thw):
    """Pass A of the HW-tiled path: lane-dense (TNt, C) f32 scratch accumulates
    per-channel spatial sums across HW chunks (grid axis 1, 'arbitrary'); the MLP
    runs on the last chunk and writes the (TNt, C, 1) gate once."""
    j = pl.program_id(1)

    @pl.when(j == 0)
    def _():
        acc_ref[...] = jnp.zeros_like(acc_ref)

    x = x_ref[...].astype(jnp.float32)
    if hw % thw != 0:   # ragged H*W: mask the out-of-bounds lanes of the last chunk
        pos = j * thw + jax.lax.broadcasted_iota(jnp.int32, x.shape, 2)
        x = jnp.where(pos < hw, x, 0.0)
    acc_ref[...] += jnp.sum(x, axis=-1)

    @pl.when(j == pl.num_programs(1) - 1)
    def _():
        pooled = acc_ref[...] * (1.0 / float(hw))
        scale = _squeeze_excite_mlp(pooled, w1t_ref[...], q1_ref[...], a1_ref[...],
                                    w2t_ref[...], q2_ref[...], a2_ref[...])
        gate_ref[...] = scale[:, :, None]


def _scse_scale_kernel(x_ref, g_ref, o_ref):
    """Pass B of the HW-tiled path: bandwidth-bound channel-wise rescale."""
    g = g_ref[...].astype(o_ref.dtype)           # (TNt, C, 1), gate in [0,1]
    o_ref[...] = x_ref[...] * g


# --------------------------------------------------------------------------
# wrapper
# --------------------------------------------------------------------------
def _vmem_caps():
    try:
        cap = int(pltpu.get_tpu_info().vmem_capacity_bytes)
    except Exception:
        cap = 64 << 20                           # v7x per-TC capacity: safe fallback
    vmem_limit = max(16 << 20, cap - (8 << 20))  # leave ~8 MiB for Mosaic scratch/sems
    tile_budget = int(vmem_limit * 0.85)
    return tile_budget, vmem_limit


def _round_up(a, b):
    return (a + b - 1) // b * b


def _largest_divisor_leq(n, cap):
    cap = max(1, min(int(n), int(cap)))
    best = 1
    for d in range(1, cap + 1):
        if n % d == 0:
            best = d
    return best


def _param_bytes(params):
    return sum(int(p.size) * p.dtype.itemsize for p in params)


def _const_spec(shape, grid_rank):
    zeros = (0,) * len(shape)
    if grid_rank == 1:
        return pl.BlockSpec(shape, lambda i: zeros)
    return pl.BlockSpec(shape, lambda i, j: zeros)


def _mlp_flops(N, C):
    C2 = C // 2
    return 2 * N * (2 * C * C2 + 2 * C2 * C2 + 2 * C * C)


def _scse_forward_impl(x, params, force_tiled=False, max_block_bytes=None):
    """x: (N, C, H, W) or (B, T, C, H, W); params from make_params."""
    if x.ndim == 5:
        B, T = x.shape[:2]
        out = _scse_forward_impl(x.reshape((B * T,) + x.shape[2:]), params,
                                 force_tiled, max_block_bytes)
        return out.reshape(x.shape)

    N, C, H, W = x.shape
    HW = H * W
    itemsize = x.dtype.itemsize

    tile_budget, vmem_limit = _vmem_caps()
    block_budget = tile_budget if max_block_bytes is None else min(tile_budget,
                                                                   int(max_block_bytes))

    # Flattened spatial on the lane axis; ragged HW handled by full-extent blocks
    # (fused path) / in-kernel masking (tiled path): no pad/slice HBM passes.
    xf = x.reshape(N, C, HW)
    pbytes = _param_bytes(params)
    slack = 256 << 10

    # fused-block residency per frame: 2x double-buffered in + 2x out (native dtype)
    # + the f32 pooling lane-chunk temp (no resident f32 slab copy).
    per_frame = C * HW * 4 * itemsize + C * min(HW, _LANE_CHUNK) * 4
    fits_fused = (per_frame + pbytes + slack) <= block_budget and not force_tiled

    if fits_fused:
        # ---------------- fused single-pass path ----------------
        avail = block_budget - pbytes - slack
        max_tn_fit = max(1, avail // per_frame)
        # ~8 MiB of DMA per step amortizes the ~0.35us per-step overhead; keep
        # >= 4 grid steps when N allows (v7x megacore sharding + pipelining).
        tn_bytes_cap = max(1, (8 << 20) // max(1, C * HW * itemsize))
        tn_cap = min(max_tn_fit, tn_bytes_cap)
        if N >= 4:
            tn_cap = min(tn_cap, N // 4)
        elif N >= 2:
            tn_cap = min(tn_cap, N // 2)
        TN = _largest_divisor_leq(N, max(1, tn_cap))
        grid = (N // TN,)

        cost = pl.CostEstimate(
            flops=int(3 * N * C * HW + _mlp_flops(N, C)),
            transcendentals=int(3 * N * C),
            bytes_accessed=int(2 * N * C * HW * itemsize + pbytes))

        out = pl.pallas_call(
            _scse_fused_kernel,
            out_shape=jax.ShapeDtypeStruct((N, C, HW), x.dtype),
            grid_spec=pltpu.PrefetchScalarGridSpec(
                num_scalar_prefetch=0,
                grid=grid,
                in_specs=[pl.BlockSpec((TN, C, HW), lambda i: (i, 0, 0))]
                         + [_const_spec(p.shape, 1) for p in params],
                out_specs=pl.BlockSpec((TN, C, HW), lambda i: (i, 0, 0)),
            ),
            compiler_params=pltpu.CompilerParams(
                dimension_semantics=("parallel",),
                vmem_limit_bytes=vmem_limit),
            cost_estimate=cost,
        )(xf, *params)
    else:
        # ------------- two-pass HW-tiled fallback (huge spatial / tiny VMEM) -------------
        # Grow the lane tile first so pass-B blocks are MiB-scale (bandwidth roofline).
        HW128 = _round_up(HW, 128)
        per_lane = C * (4 * itemsize + 4) + 8     # in x2 + out x2 + f32 mask temp
        avail = max(0, block_budget - pbytes - slack)
        max_thw = max(128, (avail // per_lane) // 128 * 128)
        THW = int(min(HW128, max_thw))
        n_hw = -(-HW // THW)

        per_frame_tiled = THW * per_lane
        max_tnt = max(1, avail // max(1, per_frame_tiled))
        if n_hw == 1 and N >= 2:                  # keep >=2 grid steps for megacore
            max_tnt = min(max_tnt, max(1, N // 2))
        TNt = _largest_divisor_leq(N, max_tnt)
        nb = N // TNt

        # Pass A: chunked spatial reduction into a lane-dense VMEM scratch + MLP on
        # the final chunk -> sigmoid gate (N, C, 1) f32 in HBM.
        gate = pl.pallas_call(
            functools.partial(_scse_reduce_kernel, hw=HW, thw=THW),
            out_shape=jax.ShapeDtypeStruct((N, C, 1), jnp.float32),
            grid_spec=pltpu.PrefetchScalarGridSpec(
                num_scalar_prefetch=0,
                grid=(nb, n_hw),
                in_specs=[pl.BlockSpec((TNt, C, THW), lambda i, j: (i, 0, j))]
                         + [_const_spec(p.shape, 2) for p in params],
                out_specs=pl.BlockSpec((TNt, C, 1), lambda i, j: (i, 0, 0)),
                scratch_shapes=[pltpu.VMEM((TNt, C), jnp.float32)],
            ),
            compiler_params=pltpu.CompilerParams(
                dimension_semantics=("parallel", "arbitrary"),
                vmem_limit_bytes=vmem_limit),
            cost_estimate=pl.CostEstimate(
                flops=int(N * C * HW + _mlp_flops(N, C)),
                transcendentals=int(3 * N * C),
                bytes_accessed=int(N * C * HW * itemsize + pbytes)),
        )(xf, *params)

        # Pass B: bandwidth-bound rescale, both grid axes parallel (megacore).
        out = pl.pallas_call(
            _scse_scale_kernel,
            out_shape=jax.ShapeDtypeStruct((N, C, HW), x.dtype),
            grid_spec=pltpu.PrefetchScalarGridSpec(
                num_scalar_prefetch=0,
                grid=(nb, n_hw),
                in_specs=[pl.BlockSpec((TNt, C, THW), lambda i, j: (i, 0, j)),
                          pl.BlockSpec((TNt, C, 1), lambda i, j: (i, 0, 0))],
                out_specs=pl.BlockSpec((TNt, C, THW), lambda i, j: (i, 0, j)),
            ),
            compiler_params=pltpu.CompilerParams(
                dimension_semantics=("parallel", "parallel"),
                vmem_limit_bytes=vmem_limit),
            cost_estimate=pl.CostEstimate(
                flops=int(N * C * HW),
                transcendentals=0,
                bytes_accessed=int(2 * N * C * HW * itemsize + N * C * 4)),
        )(xf, gate)

    return out.reshape(N, C, H, W)


scse_forward = jax.jit(_scse_forward_impl,
                       static_argnames=("force_tiled", "max_block_bytes"))


# --------------------------------------------------------------------------
# pure-JAX reference (mirrors the PyTorch forward_single)
# --------------------------------------------------------------------------
def reference_forward(x, params):
    (w1t, q1, _a1, w2t, q2, _a2) = params
    if x.ndim == 5:
        B, T = x.shape[:2]
        out = reference_forward(x.reshape((B * T,) + x.shape[2:]), params)
        return out.reshape(x.shape)
    N, C, H, W = x.shape
    G1, G2 = C // 8, C // 4

    def gn(y, G, gamma, beta):
        n, Cn = y.shape
        yg = y.reshape(n, G, Cn // G)
        mean = yg.mean(-1, keepdims=True)
        var = ((yg - mean) ** 2).mean(-1, keepdims=True)
        yn = ((yg - mean) / jnp.sqrt(var + EPS)).reshape(n, Cn)
        return yn * gamma[None, :] + beta[None, :]

    xf = x.astype(jnp.float32)
    pooled = xf.mean(axis=(2, 3))                       # (N, C)
    y = pooled @ w1t + q1[0][None, :]
    y = gn(y, G1, q1[1], q1[2])
    y = y * jnp.clip(y + 3.0, 0.0, 6.0) / 6.0
    z = y @ w2t + q2[0][None, :]
    z = gn(z, G2, q2[1], q2[2])
    s = jax.nn.sigmoid(z)
    return (xf * s[:, :, None, None]).astype(x.dtype)


# --------------------------------------------------------------------------
# smoke test
# --------------------------------------------------------------------------
if __name__ == "__main__":
    key = jax.random.PRNGKey(0)
    k_x, k_p = jax.random.split(key)

    B, C, H, W = 2, 16, 16, 16           # C must be a multiple of 8 (GroupNorm(out//8))
    x = jax.random.normal(k_x, (B, C, H, W), jnp.float32)
    params = make_params(C, k_p)

    ref = reference_forward(x, params)

    # 1) fused single-pass path (streaming pool + gate, >=2 grid steps)
    out = jax.block_until_ready(scse_forward(x, params))
    assert out.shape == x.shape and out.dtype == x.dtype
    assert jnp.allclose(out, ref, atol=1e-4, rtol=1e-4), "fused path mismatch"

    # 2) two-pass HW-tiled path (the huge-spatial / tiny-VMEM fallback), forced here
    #    with a small block budget so it is exercised at test shapes too.
    out_t = jax.block_until_ready(
        scse_forward(x, params, force_tiled=True, max_block_bytes=48 * 1024))
    assert out_t.shape == x.shape and out_t.dtype == x.dtype
    assert jnp.allclose(out_t, ref, atol=1e-4, rtol=1e-4), "tiled path mismatch"

    print("KERNEL_OK")
</pallas_src>

<mosaic_0001>
module attributes {stable_mosaic.version = 11 : i64} {
  func.func @_scse_fused_kernel(%arg0: i32, %arg1: memref<1x16x256xf32, #tpu.memory_space<vmem>>, %arg2: memref<16x8xf32, #tpu.memory_space<vmem>>, %arg3: memref<3x8xf32, #tpu.memory_space<vmem>>, %arg4: memref<8x8xf32, #tpu.memory_space<vmem>>, %arg5: memref<8x16xf32, #tpu.memory_space<vmem>>, %arg6: memref<3x16xf32, #tpu.memory_space<vmem>>, %arg7: memref<16x16xf32, #tpu.memory_space<vmem>>, %arg8: memref<1x16x256xf32, #tpu.memory_space<vmem>>) attributes {dimension_semantics = [#tpu.dimension_semantics<parallel>], iteration_bounds = array<i64: 2>, scalar_prefetch = 0 : i64, scratch_operands = 0 : i64, tpu.core_type = #tpu.core_type<tc>, window_params = [{transform_indices = @transform_0, window_bounds = array<i64: 1, 16, 256>}, {pipeline_mode = #tpu.pipeline_mode<synchronous>, transform_indices = @transform_1, window_bounds = array<i64: 16, 8>}, {pipeline_mode = #tpu.pipeline_mode<synchronous>, transform_indices = @transform_2, window_bounds = array<i64: 3, 8>}, {pipeline_mode = #tpu.pipeline_mode<synchronous>, transform_indices = @transform_3, window_bounds = array<i64: 8, 8>}, {pipeline_mode = #tpu.pipeline_mode<synchronous>, transform_indices = @transform_4, window_bounds = array<i64: 8, 16>}, {pipeline_mode = #tpu.pipeline_mode<synchronous>, transform_indices = @transform_5, window_bounds = array<i64: 3, 16>}, {pipeline_mode = #tpu.pipeline_mode<synchronous>, transform_indices = @transform_6, window_bounds = array<i64: 16, 16>}, {transform_indices = @transform_7, window_bounds = array<i64: 1, 16, 256>}]} {
    %cst = arith.constant 0.000000e+00 : f32
    %0 = vector.broadcast %cst : f32 to vector<1x16xf32>
    %c0 = arith.constant 0 : index
    %c0_0 = arith.constant 0 : index
    %c0_1 = arith.constant 0 : index
    %1 = vector.load %arg1[%c0, %c0_0, %c0_1] : memref<1x16x256xf32, #tpu.memory_space<vmem>>, vector<1x16x256xf32>
    %cst_2 = arith.constant dense<0.000000e+00> : vector<1x16xf32>
    %2 = vector.multi_reduction <add>, %1, %cst_2 [2] : vector<1x16x256xf32> to vector<1x16xf32>
    %3 = arith.addf %0, %2 : vector<1x16xf32>
    %cst_3 = arith.constant 3.906250e-03 : f32
    %4 = vector.broadcast %cst_3 : f32 to vector<1x16xf32>
    %5 = arith.mulf %3, %4 : vector<1x16xf32>
    %c0_4 = arith.constant 0 : index
    %c0_5 = arith.constant 0 : index
    %6 = vector.load %arg2[%c0_4, %c0_5] : memref<16x8xf32, #tpu.memory_space<vmem>>, vector<16x8xf32>
    %c0_6 = arith.constant 0 : index
    %c0_7 = arith.constant 0 : index
    %7 = vector.load %arg3[%c0_6, %c0_7] : memref<3x8xf32, #tpu.memory_space<vmem>>, vector<3x8xf32>
    %c0_8 = arith.constant 0 : index
    %c0_9 = arith.constant 0 : index
    %8 = vector.load %arg4[%c0_8, %c0_9] : memref<8x8xf32, #tpu.memory_space<vmem>>, vector<8x8xf32>
    %c0_10 = arith.constant 0 : index
    %c0_11 = arith.constant 0 : index
    %9 = vector.load %arg5[%c0_10, %c0_11] : memref<8x16xf32, #tpu.memory_space<vmem>>, vector<8x16xf32>
    %c0_12 = arith.constant 0 : index
    %c0_13 = arith.constant 0 : index
    %10 = vector.load %arg6[%c0_12, %c0_13] : memref<3x16xf32, #tpu.memory_space<vmem>>, vector<3x16xf32>
    %c0_14 = arith.constant 0 : index
    %c0_15 = arith.constant 0 : index
    %11 = vector.load %arg7[%c0_14, %c0_15] : memref<16x16xf32, #tpu.memory_space<vmem>>, vector<16x16xf32>
    %cst_16 = arith.constant dense<0.000000e+00> : vector<1x8xf32>
    %12 = tpu.matmul %5, %6, %cst_16 {dimension_numbers = #tpu.dot_dimension_numbers<[1], [0], [0], [1], [0, 0, 1, 1], [], []>} : vector<1x16xf32>, vector<16x8xf32>, vector<1x8xf32> -> vector<1x8xf32>
    %13 = vector.extract_strided_slice %7 {offsets = [0, 0], sizes = [1, 8], strides = [1, 1]} : vector<3x8xf32> to vector<1x8xf32>
    %14 = arith.addf %12, %13 : vector<1x8xf32>
    %cst_17 = arith.constant dense<0.000000e+00> : vector<1x8xf32>
    %15 = tpu.matmul %14, %8, %cst_17 {dimension_numbers = #tpu.dot_dimension_numbers<[1], [0], [0], [1], [0, 0, 1, 1], [], []>} : vector<1x8xf32>, vector<8x8xf32>, vector<1x8xf32> -> vector<1x8xf32>
    %16 = arith.subf %14, %15 : vector<1x8xf32>
    %17 = arith.mulf %16, %16 : vector<1x8xf32>
    %cst_18 = arith.constant dense<0.000000e+00> : vector<1x8xf32>
    %18 = tpu.matmul %17, %8, %cst_18 {dimension_numbers = #tpu.dot_dimension_numbers<[1], [0], [0], [1], [0, 0, 1, 1], [], []>} : vector<1x8xf32>, vector<8x8xf32>, vector<1x8xf32> -> vector<1x8xf32>
    %cst_19 = arith.constant 9.99999974E-6 : f32
    %19 = vector.broadcast %cst_19 : f32 to vector<1x8xf32>
    %20 = arith.addf %18, %19 : vector<1x8xf32>
    %21 = math.rsqrt %20 : vector<1x8xf32>
    %22 = arith.mulf %16, %21 : vector<1x8xf32>
    %23 = vector.extract_strided_slice %7 {offsets = [1, 0], sizes = [1, 8], strides = [1, 1]} : vector<3x8xf32> to vector<1x8xf32>
    %24 = arith.mulf %22, %23 : vector<1x8xf32>
    %25 = vector.extract_strided_slice %7 {offsets = [2, 0], sizes = [1, 8], strides = [1, 1]} : vector<3x8xf32> to vector<1x8xf32>
    %26 = arith.addf %24, %25 : vector<1x8xf32>
    %cst_20 = arith.constant 3.000000e+00 : f32
    %27 = vector.broadcast %cst_20 : f32 to vector<1x8xf32>
    %28 = arith.addf %26, %27 : vector<1x8xf32>
    %cst_21 = arith.constant 0.000000e+00 : f32
    %cst_22 = arith.constant 6.000000e+00 : f32
    %29 = vector.broadcast %cst_21 : f32 to vector<1x8xf32>
    %30 = arith.maximumf %29, %28 : vector<1x8xf32>
    %31 = vector.broadcast %cst_22 : f32 to vector<1x8xf32>
    %32 = arith.minimumf %31, %30 : vector<1x8xf32>
    %33 = arith.mulf %26, %32 : vector<1x8xf32>
    %cst_23 = arith.constant 0.166666672 : f32
    %34 = vector.broadcast %cst_23 : f32 to vector<1x8xf32>
    %35 = arith.mulf %33, %34 : vector<1x8xf32>
    %cst_24 = arith.constant dense<0.000000e+00> : vector<1x16xf32>
    %36 = tpu.matmul %35, %9, %cst_24 {dimension_numbers = #tpu.dot_dimension_numbers<[1], [0], [0], [1], [0, 0, 1, 1], [], []>} : vector<1x8xf32>, vector<8x16xf32>, vector<1x16xf32> -> vector<1x16xf32>
    %37 = vector.extract_strided_slice %10 {offsets = [0, 0], sizes = [1, 16], strides = [1, 1]} : vector<3x16xf32> to vector<1x16xf32>
    %38 = arith.addf %36, %37 : vector<1x16xf32>
    %cst_25 = arith.constant dense<0.000000e+00> : vector<1x16xf32>
    %39 = tpu.matmul %38, %11, %cst_25 {dimension_numbers = #tpu.dot_dimension_numbers<[1], [0], [0], [1], [0, 0, 1, 1], [], []>} : vector<1x16xf32>, vector<16x16xf32>, vector<1x16xf32> -> vector<1x16xf32>
    %40 = arith.subf %38, %39 : vector<1x16xf32>
    %41 = arith.mulf %40, %40 : vector<1x16xf32>
    %cst_26 = arith.constant dense<0.000000e+00> : vector<1x16xf32>
    %42 = tpu.matmul %41, %11, %cst_26 {dimension_numbers = #tpu.dot_dimension_numbers<[1], [0], [0], [1], [0, 0, 1, 1], [], []>} : vector<1x16xf32>, vector<16x16xf32>, vector<1x16xf32> -> vector<1x16xf32>
    %cst_27 = arith.constant 9.99999974E-6 : f32
    %43 = vector.broadcast %cst_27 : f32 to vector<1x16xf32>
    %44 = arith.addf %42, %43 : vector<1x16xf32>
    %45 = math.rsqrt %44 : vector<1x16xf32>
    %46 = arith.mulf %40, %45 : vector<1x16xf32>
    %47 = vector.extract_strided_slice %10 {offsets = [1, 0], sizes = [1, 16], strides = [1, 1]} : vector<3x16xf32> to vector<1x16xf32>
    %48 = arith.mulf %46, %47 : vector<1x16xf32>
    %49 = vector.extract_strided_slice %10 {offsets = [2, 0], sizes = [1, 16], strides = [1, 1]} : vector<3x16xf32> to vector<1x16xf32>
    %50 = arith.addf %48, %49 : vector<1x16xf32>
    %51 = arith.negf %50 : vector<1x16xf32>
    %52 = math.exp %51 : vector<1x16xf32>
    %cst_28 = arith.constant 1.000000e+00 : f32
    %53 = vector.broadcast %cst_28 : f32 to vector<1x16xf32>
    %54 = arith.addf %53, %52 : vector<1x16xf32>
    %55 = arith.divf %53, %54 : vector<1x16xf32>
    %c0_29 = arith.constant 0 : index
    %c0_30 = arith.constant 0 : index
    %c0_31 = arith.constant 0 : index
    %56 = vector.load %arg1[%c0_29, %c0_30, %c0_31] : memref<1x16x256xf32, #tpu.memory_space<vmem>>, vector<1x16x256xf32>
    %57 = vector.shape_cast %55 : vector<1x16xf32> to vector<1x16x1xf32>
    %58 = vector.broadcast %57 : vector<1x16x1xf32> to vector<1x16x256xf32>
    %59 = arith.mulf %56, %58 : vector<1x16x256xf32>
    %c0_32 = arith.constant 0 : index
    %c0_33 = arith.constant 0 : index
    %c0_34 = arith.constant 0 : index
    %60 = vector.load %arg8[%c0_32, %c0_33, %c0_34] : memref<1x16x256xf32, #tpu.memory_space<vmem>>, vector<1x16x256xf32>
    tpu.vector_store %arg8[%c0_32, %c0_33, %c0_34], %59 {strides = array<i32>} : memref<1x16x256xf32, #tpu.memory_space<vmem>>, vector<1x16x256xf32>,
    return
  }
  func.func @transform_0(%arg0: i32) -> (i32, i32, i32) {
    %c0_i32 = arith.constant 0 : i32
    %c0_i32_0 = arith.constant 0 : i32
    %c0_i32_1 = arith.constant 0 : i32
    return %arg0, %c0_i32, %c0_i32_0 : i32, i32, i32
  }
  func.func @transform_1(%arg0: i32) -> (i32, i32) {
    %c0_i32 = arith.constant 0 : i32
    %c0_i32_0 = arith.constant 0 : i32
    %c0_i32_1 = arith.constant 0 : i32
    return %c0_i32, %c0_i32_0 : i32, i32
  }
  func.func @transform_2(%arg0: i32) -> (i32, i32) {
    %c0_i32 = arith.constant 0 : i32
    %c0_i32_0 = arith.constant 0 : i32
    %c0_i32_1 = arith.constant 0 : i32
    return %c0_i32, %c0_i32_0 : i32, i32
  }
  func.func @transform_3(%arg0: i32) -> (i32, i32) {
    %c0_i32 = arith.constant 0 : i32
    %c0_i32_0 = arith.constant 0 : i32
    %c0_i32_1 = arith.constant 0 : i32
    return %c0_i32, %c0_i32_0 : i32, i32
  }
  func.func @transform_4(%arg0: i32) -> (i32, i32) {
    %c0_i32 = arith.constant 0 : i32
    %c0_i32_0 = arith.constant 0 : i32
    %c0_i32_1 = arith.constant 0 : i32
    return %c0_i32, %c0_i32_0 : i32, i32
  }
  func.func @transform_5(%arg0: i32) -> (i32, i32) {
    %c0_i32 = arith.constant 0 : i32
    %c0_i32_0 = arith.constant 0 : i32
    %c0_i32_1 = arith.constant 0 : i32
    return %c0_i32, %c0_i32_0 : i32, i32
  }
  func.func @transform_6(%arg0: i32) -> (i32, i32) {
    %c0_i32 = arith.constant 0 : i32
    %c0_i32_0 = arith.constant 0 : i32
    %c0_i32_1 = arith.constant 0 : i32
    return %c0_i32, %c0_i32_0 : i32, i32
  }
  func.func @transform_7(%arg0: i32) -> (i32, i32, i32) {
    %c0_i32 = arith.constant 0 : i32
    %c0_i32_0 = arith.constant 0 : i32
    %c0_i32_1 = arith.constant 0 : i32
    return %arg0, %c0_i32, %c0_i32_0 : i32, i32, i32
  }
}

</mosaic_0001>

<llo_original>
// kernel: _scse_forward_impl.1
$region0: #{_scse_forward_impl.1}
  #allocation0 [shape = 'u32[]', space=smem, size = 0x4, offset = 0x4, fixed_abs, tag = 'smem constant byte address 0x4 - core index']
  #allocation1 [shape = 'u32[144,128]{1,0:T(1,128)}', space=vmem, size = 0x12000, scoped, tag = 'internal scratch']
  %s0 = inlined_call_operand.vmem [shape: f32[2,16,256], index: 0, kind: input, shape index: {}]
  %s1 = inlined_call_operand.vmem [shape: f32[16,8], index: 1, kind: input, shape index: {}]
  %s2 = inlined_call_operand.vmem [shape: f32[3,8], index: 2, kind: input, shape index: {}]
  %s3 = inlined_call_operand.vmem [shape: f32[8,8], index: 3, kind: input, shape index: {}]
  %s4 = inlined_call_operand.vmem [shape: f32[8,16], index: 4, kind: input, shape index: {}]
  %s5 = inlined_call_operand.vmem [shape: f32[3,16], index: 5, kind: input, shape index: {}]
  %s6 = inlined_call_operand.vmem [shape: f32[16,16], index: 6, kind: input, shape index: {}]
  %s7 = inlined_call_operand.vmem [shape: f32[2,16,256], index: 7, kind: output, shape index: {}]
  %s8 = sld [smem:[#allocation0]]
  $region61: #{_scse_forward_impl.1} parent=0
    _
  %s10 = ssub.s32 1, %s8
  %s11 = scalar_select 0, %s10, %s8
  loop: start=0, step=1, limit=4
  $region2: #{_scse_forward_impl.1} parent=0 // loop_pre_header
    _
  $region3: #{_scse_forward_impl.1} parent=0 // loop_header
    %s13 = sphi 0, %s17
    %p14 = scmp.ge.s32.totalorder %s13, 4
    %s23 = sphi 0, %s25
    %s26 = sphi 0, %s23
    %s27 = sphi 0, %s26
    %s43 = sphi 0, %s27
    %s47 = sphi 0, %s47
    %s49 = sphi 0, %s47
    %s50 = sphi 0, %s49
    %s64 = sphi 0, %s50
    %s68 = sphi 0, %s68
    %s70 = sphi 0, %s68
    %s71 = sphi 0, %s70
    %s85 = sphi 0, %s71
    %s89 = sphi 0, %s89
    %s91 = sphi 0, %s89
    %s92 = sphi 0, %s91
    %s106 = sphi 0, %s92
    %s110 = sphi 0, %s110
    %s112 = sphi 0, %s110
    %s113 = sphi 0, %s112
    %s127 = sphi 0, %s113
    %s131 = sphi 0, %s131
    %s133 = sphi 0, %s131
    %s134 = sphi 0, %s133
    %s148 = sphi 0, %s134
    %s152 = sphi 0, %s152
    %s154 = sphi 0, %s152
    %s155 = sphi 0, %s154
    %s169 = sphi 0, %s155
    %s175 = sphi 0, %s177
    %s178 = sphi 0, %s175
    %s179 = sphi 0, %s178
    %s195 = sphi 0, %s179
  $region4: #{_scse_forward_impl.1} parent=0 // loop_header_branch
    %16 = sbr.rel (%p14) target = $region8
  $region5: #{_scse_forward_impl.1} parent=0 // loop_body
    %s18 = ssub.s32 %s13, 1
    %s19 = ssub.s32 %s13, 2
    %s20 = sadd.s32 %s13, 1
    %s21 = ssub.s32 %s13, %s20
    %p22 = scmp.eq.s32.totalorder %s21, 0
    %s24 = sadd.s32 %s23, 1
    %s25 = scalar_select %p22, %s23, %s24
    %p28 = pneg %p22
    %p29 = scmp.eq.s32.totalorder %s13, 1
    %p30 = por %p28, %p29
    %p31 = scmp.ne.s32.totalorder %s23, %s26
    %p32 = scmp.eq.s32.totalorder %s13, 0
    %p33 = por %p31, %p32
    %p34 = scmp.ne.s32.totalorder %s23, %s26
    %p35 = scmp.eq.s32.totalorder %s18, 1
    %p36 = por %p34, %p35
    %p37 = scmp.ne.s32.totalorder %s26, %s27
    %p38 = scmp.eq.s32.totalorder %s18, 0
    %p39 = por %p37, %p38
    %p40 = scmp.ne.s32.totalorder %s26, %s27
    %p41 = scmp.eq.s32.totalorder %s19, 1
    %p42 = por %p40, %p41
    %p44 = scmp.ne.s32.totalorder %s27, %s43
    %p45 = scmp.eq.s32.totalorder %s19, 0
    %p46 = por %p44, %p45
    %s48 = sadd.s32 %s47, 1
    %p51 = scmp.eq.s32.totalorder %s13, 1
    %p52 = scmp.ne.s32.totalorder %s47, %s49
    %p53 = scmp.eq.s32.totalorder %s13, 0
    %p54 = por %p52, %p53
    %p55 = scmp.ne.s32.totalorder %s47, %s49
    %p56 = scmp.eq.s32.totalorder %s18, 1
    %p57 = por %p55, %p56
    %p58 = scmp.ne.s32.totalorder %s49, %s50
    %p59 = scmp.eq.s32.totalorder %s18, 0
    %p60 = por %p58, %p59
    %p61 = scmp.ne.s32.totalorder %s49, %s50
    %p62 = scmp.eq.s32.totalorder %s19, 1
    %p63 = por %p61, %p62
    %p65 = scmp.ne.s32.totalorder %s50, %s64
    %p66 = scmp.eq.s32.totalorder %s19, 0
    %p67 = por %p65, %p66
    %s69 = sadd.s32 %s68, 1
    %p72 = scmp.eq.s32.totalorder %s13, 1
    %p73 = scmp.ne.s32.totalorder %s68, %s70
    %p74 = scmp.eq.s32.totalorder %s13, 0
    %p75 = por %p73, %p74
    %p76 = scmp.ne.s32.totalorder %s68, %s70
    %p77 = scmp.eq.s32.totalorder %s18, 1
    %p78 = por %p76, %p77
    %p79 = scmp.ne.s32.totalorder %s70, %s71
    %p80 = scmp.eq.s32.totalorder %s18, 0
    %p81 = por %p79, %p80
    %p82 = scmp.ne.s32.totalorder %s70, %s71
    %p83 = scmp.eq.s32.totalorder %s19, 1
    %p84 = por %p82, %p83
    %p86 = scmp.ne.s32.totalorder %s71, %s85
    %p87 = scmp.eq.s32.totalorder %s19, 0
    %p88 = por %p86, %p87
    %s90 = sadd.s32 %s89, 1
    %p93 = scmp.eq.s32.totalorder %s13, 1
    %p94 = scmp.ne.s32.totalorder %s89, %s91
    %p95 = scmp.eq.s32.totalorder %s13, 0
    %p96 = por %p94, %p95
    %p97 = scmp.ne.s32.totalorder %s89, %s91
    %p98 = scmp.eq.s32.totalorder %s18, 1
    %p99 = por %p97, %p98
    %p100 = scmp.ne.s32.totalorder %s91, %s92
    %p101 = scmp.eq.s32.totalorder %s18, 0
    %p102 = por %p100, %p101
    %p103 = scmp.ne.s32.totalorder %s91, %s92
    %p104 = scmp.eq.s32.totalorder %s19, 1
    %p105 = por %p103, %p104
    %p107 = scmp.ne.s32.totalorder %s92, %s106
    %p108 = scmp.eq.s32.totalorder %s19, 0
    %p109 = por %p107, %p108
    %s111 = sadd.s32 %s110, 1
    %p114 = scmp.eq.s32.totalorder %s13, 1
    %p115 = scmp.ne.s32.totalorder %s110, %s112
    %p116 = scmp.eq.s32.totalorder %s13, 0
    %p117 = por %p115, %p116
    %p118 = scmp.ne.s32.totalorder %s110, %s112
    %p119 = scmp.eq.s32.totalorder %s18, 1
    %p120 = por %p118, %p119
    %p121 = scmp.ne.s32.totalorder %s112, %s113
    %p122 = scmp.eq.s32.totalorder %s18, 0
    %p123 = por %p121, %p122
    %p124 = scmp.ne.s32.totalorder %s112, %s113
    %p125 = scmp.eq.s32.totalorder %s19, 1
    %p126 = por %p124, %p125
    %p128 = scmp.ne.s32.totalorder %s113, %s127
    %p129 = scmp.eq.s32.totalorder %s19, 0
    %p130 = por %p128, %p129
    %s132 = sadd.s32 %s131, 1
    %p135 = scmp.eq.s32.totalorder %s13, 1
    %p136 = scmp.ne.s32.totalorder %s131, %s133
    %p137 = scmp.eq.s32.totalorder %s13, 0
    %p138 = por %p136, %p137
    %p139 = scmp.ne.s32.totalorder %s131, %s133
    %p140 = scmp.eq.s32.totalorder %s18, 1
    %p141 = por %p139, %p140
    %p142 = scmp.ne.s32.totalorder %s133, %s134
    %p143 = scmp.eq.s32.totalorder %s18, 0
    %p144 = por %p142, %p143
    %p145 = scmp.ne.s32.totalorder %s133, %s134
    %p146 = scmp.eq.s32.totalorder %s19, 1
    %p147 = por %p145, %p146
    %p149 = scmp.ne.s32.totalorder %s134, %s148
    %p150 = scmp.eq.s32.totalorder %s19, 0
    %p151 = por %p149, %p150
    %s153 = sadd.s32 %s152, 1
    %p156 = scmp.eq.s32.totalorder %s13, 1
    %p157 = scmp.ne.s32.totalorder %s152, %s154
    %p158 = scmp.eq.s32.totalorder %s13, 0
    %p159 = por %p157, %p158
    %p160 = scmp.ne.s32.totalorder %s152, %s154
    %p161 = scmp.eq.s32.totalorder %s18, 1
    %p162 = por %p160, %p161
    %p163 = scmp.ne.s32.totalorder %s154, %s155
    %p164 = scmp.eq.s32.totalorder %s18, 0
    %p165 = por %p163, %p164
    %p166 = scmp.ne.s32.totalorder %s154, %s155
    %p167 = scmp.eq.s32.totalorder %s19, 1
    %p168 = por %p166, %p167
    %p170 = scmp.ne.s32.totalorder %s155, %s169
    %p171 = scmp.eq.s32.totalorder %s19, 0
    %p172 = por %p170, %p171
    %s173 = ssub.s32 %s13, %s20
    %p174 = scmp.eq.s32.totalorder %s173, 0
    %s176 = sadd.s32 %s175, 1
    %s177 = scalar_select %p174, %s175, %s176
    %p180 = pneg %p174
    %p181 = scmp.eq.s32.totalorder %s13, 1
    %p182 = por %p180, %p181
    %p183 = scmp.ne.s32.totalorder %s175, %s178
    %p184 = scmp.eq.s32.totalorder %s13, 0
    %p185 = por %p183, %p184
    %p186 = scmp.ne.s32.totalorder %s175, %s178
    %p187 = scmp.eq.s32.totalorder %s18, 1
    %p188 = por %p186, %p187
    %p189 = scmp.ne.s32.totalorder %s178, %s179
    %p190 = scmp.eq.s32.totalorder %s18, 0
    %p191 = por %p189, %p190
    %p192 = scmp.ne.s32.totalorder %s178, %s179
    %p193 = scmp.eq.s32.totalorder %s19, 1
    %p194 = por %p192, %p193
    %p196 = scmp.ne.s32.totalorder %s179, %s195
    %p197 = scmp.eq.s32.totalorder %s19, 0
    %p198 = por %p196, %p197
    %p199 = scmp.le.s32.totalorder 1, %s13
    %p200 = scmp.lt.s32.totalorder %s13, 3
    %p201 = pnand %p199, %p200
    %p202 = pneg %p201
    // Predicated region
    $region9: #{_scse_forward_impl.1} parent=5 // pred_check
      _
    $region10: #{_scse_forward_impl.1} parent=5 // pred_check_branch
      %204 = sbr.rel (%p201) target = $region12
    $region11: #{_scse_forward_impl.1} parent=5 // pred_region
      %s205 = ssub.s32 %s13, 1
      // Predicated region
      $region13: #{_scse_forward_impl.1} parent=11 // pred_check
        %p206 = pneg %p60
      $region14: #{_scse_forward_impl.1} parent=11 // pred_check_branch
        %208 = sbr.rel (%p206) target = $region16
      $region15: #{_scse_forward_impl.1} parent=11 // pred_region
        _
      $region16: #{_scse_forward_impl.1} parent=11 // pred_fallthru
        _
      // Predicated region
      $region17: #{_scse_forward_impl.1} parent=11 // pred_check
        %p209 = pneg %p81
      $region18: #{_scse_forward_impl.1} parent=11 // pred_check_branch
        %211 = sbr.rel (%p209) target = $region20
      $region19: #{_scse_forward_impl.1} parent=11 // pred_region
        _
      $region20: #{_scse_forward_impl.1} parent=11 // pred_fallthru
        _
      // Predicated region
      $region21: #{_scse_forward_impl.1} parent=11 // pred_check
        %p212 = pneg %p102
      $region22: #{_scse_forward_impl.1} parent=11 // pred_check_branch
        %214 = sbr.rel (%p212) target = $region24
      $region23: #{_scse_forward_impl.1} parent=11 // pred_region
        _
      $region24: #{_scse_forward_impl.1} parent=11 // pred_fallthru
        _
      // Predicated region
      $region25: #{_scse_forward_impl.1} parent=11 // pred_check
        %p215 = pneg %p123
      $region26: #{_scse_forward_impl.1} parent=11 // pred_check_branch
        %217 = sbr.rel (%p215) target = $region28
      $region27: #{_scse_forward_impl.1} parent=11 // pred_region
        _
      $region28: #{_scse_forward_impl.1} parent=11 // pred_fallthru
        _
      // Predicated region
      $region29: #{_scse_forward_impl.1} parent=11 // pred_check
        %p218 = pneg %p144
      $region30: #{_scse_forward_impl.1} parent=11 // pred_check_branch
        %220 = sbr.rel (%p218) target = $region32
      $region31: #{_scse_forward_impl.1} parent=11 // pred_region
        _
      $region32: #{_scse_forward_impl.1} parent=11 // pred_fallthru
        _
      // Predicated region
      $region33: #{_scse_forward_impl.1} parent=11 // pred_check
        %p221 = pneg %p165
      $region34: #{_scse_forward_impl.1} parent=11 // pred_check_branch
        %223 = sbr.rel (%p221) target = $region36
      $region35: #{_scse_forward_impl.1} parent=11 // pred_region
        _
      $region36: #{_scse_forward_impl.1} parent=11 // pred_fallthru
        _
    $region12: #{_scse_forward_impl.1} parent=5 // pred_fallthru
      _
    %p224 = scmp.lt.s32.totalorder %s13, 2
    // Predicated region
    $region37: #{_scse_forward_impl.1} parent=5 // pred_check
      %p225 = pneg %p224
    $region38: #{_scse_forward_impl.1} parent=5 // pred_check_branch
      %227 = sbr.rel (%p225) target = $region40
    $region39: #{_scse_forward_impl.1} parent=5 // pred_region
      // Predicated region
      $region41: #{_scse_forward_impl.1} parent=39 // pred_check
        %p228 = pneg %p33
      $region42: #{_scse_forward_impl.1} parent=39 // pred_check_branch
        %230 = sbr.rel (%p228) target = $region44
      $region43: #{_scse_forward_impl.1} parent=39 // pred_region
        %p231 = scmp.lt.s32.totalorder %s13, 1
        %s232 = scalar_select %p231, %s13, 1
        %s233 = smul.addr %s232, 4
        %s234 = smul.addr %s233, 8
        %s235 = scalar_lea.vmem %s0, %s234
      $region44: #{_scse_forward_impl.1} parent=39 // pred_fallthru
        _
    $region40: #{_scse_forward_impl.1} parent=5 // pred_fallthru
      _
    %p236 = scmp.le.s32.totalorder 1, %s13
    %p237 = scmp.lt.s32.totalorder %s13, 3
    %p238 = pnand %p236, %p237
    %p239 = pneg %p238
    // Predicated region
    $region45: #{_scse_forward_impl.1} parent=5 // pred_check
      _
    $region46: #{_scse_forward_impl.1} parent=5 // pred_check_branch
      %241 = sbr.rel (%p238) target = $region48
    $region47: #{_scse_forward_impl.1} parent=5 // pred_region
      %s242 = ssub.s32 %s13, 1
      %p243 = scmp.lt.s32.totalorder %s18, 1
      %s244 = scalar_select %p243, %s18, 1
      %s245 = smul.addr %s244, 4
      %s246 = smul.addr %s245, 8
      %s247 = scalar_lea.vmem %s0, %s246
      %p248 = pneg %p39
      %p249 = pneg %p36
      %p250 = pneg %p60
      %p251 = pneg %p57
      %p252 = pneg %p81
      %p253 = pneg %p78
      %p254 = pneg %p102
      %p255 = pneg %p99
      %p256 = pneg %p123
      %p257 = pneg %p120
      %p258 = pneg %p144
      %p259 = pneg %p141
      %p260 = pneg %p165
      %p261 = pneg %p162
      %p262 = pneg %p191
      %p263 = pneg %p188
      %p264 = scmp.lt.s32.totalorder %s18, 1
      %s265 = scalar_select %p264, %s18, 1
      %s266 = smul.addr %s265, 4
      %s267 = smul.addr %s266, 8
      %s268 = scalar_lea.vmem %s7, %s267
      %p269 = scmp.lt.s32.totalorder %s18, 1
      %s270 = scalar_select %p269, %s18, 1
      %s271 = smul.addr %s270, 4
      %s272 = smul.addr %s271, 8
      %s273 = scalar_lea.vmem %s0, %s272
      %p274 = scmp.lt.s32.totalorder %s18, 1
      %s275 = scalar_select %p274, %s18, 1
      %s276 = smul.addr %s275, 4
      %s277 = smul.addr %s276, 8
      %s278 = scalar_lea.vmem %s7, %s277
      %v279 = vld [vmem:[%s273] sm:$0xff]
      %v280 = vld [vmem:[%s273 + $0x8] sm:$0xff]
      %v281 = vld [vmem:[%s273 + $0x10] sm:$0xff]
      %v282 = vld [vmem:[%s273 + $0x18] sm:$0xff]
      %v283 = vadd.f32 %v279, %v280
      %284 = vadd.xlane.f32.xlu0 %v283
      %v285 = vpop.xlane.xlu0 %284
      %v286 = vadd.f32 %v281, %v282
      %287 = vadd.xlane.f32.xlu0 %v286
      %v288 = vpop.xlane.xlu0 %287
      %v289 = vadd.f32 %v285, 0.0
      %v290 = vadd.f32 %v288, 0.0
      %v291 = vmul.f32 %v289, 0.00390625
      %v292 = vmul.f32 %v290, 0.00390625
      %v293 = vld [vmem:[%s1] sm:$0xff]
      %v294 = vld [vmem:[%s1 + $0x8] sm:$0xff]
      %v295 = vld [vmem:[%s2] sm:$0x7]
      %v296 = vld [vmem:[%s3] sm:$0xff]
      %v297 = vld [vmem:[%s4] sm:$0xff]
      %v298 = vld [vmem:[%s5] sm:$0x7]
      %v299 = vld [vmem:[%s6] sm:$0xff]
      %v300 = vld [vmem:[%s6 + $0x8] sm:$0xff]
      %v303 = vlaneseq
      %v304 = vand.u32 %v303, 127
      %v305 = vlaneseq
      %v306 = vshrl.u32 %v305, 7
      %v307 = vsub.s32 %v304, %v306
      %v308 = vrot.slane %v291, %v307
      %v309 = vadd.s32 %v304, 4294967288
      %v310 = vlaneseq
      %v311 = vshrl.u32 %v310, 7
      %v312 = vsub.s32 %v309, %v311
      %v313 = vrot.slane %v292, %v312
      %vm314 = vcmask 130112
      %v315 = vsel %vm314, %v313, %v308
      %vm316 = vcmask 130048
      %v317 = vsel %vm316, %v315, 0
      %319 = vmatprep.subr.mxu0 0.0
      %320 = vmatpush1.msra.mxu0 %v293
      %321 = vmatprep.subr.mxu0 0.0
      %322 = vmatpush1.msra.mxu0 %v294
      %323 = vmatprep.subr.mxu0 0.0
      %324 = vmatpush1.msra.mxu0 0.0
      %325 = vmatprep.subr.mxu0 0.0
      %326 = vmatpush1.msra.mxu0 0.0
      %327 = vmatprep.subr.mxu0 0.0
      %328 = vmatpush1.msra.mxu0 0.0
      %329 = vmatprep.subr.mxu0 0.0
      %330 = vmatpush1.msra.mxu0 0.0
      %331 = vmatprep.subr.mxu0 0.0
      %332 = vmatpush1.msra.mxu0 0.0
      %333 = vmatprep.subr.mxu0 0.0
      %334 = vmatpush1.msra.mxu0 0.0
      %335 = vmatprep.subr.mxu0 0.0
      %336 = vmatpush1.msra.mxu0 0.0
      %337 = vmatprep.subr.mxu0 0.0
      %338 = vmatpush1.msra.mxu0 0.0
      %339 = vmatprep.subr.mxu0 0.0
      %340 = vmatpush1.msra.mxu0 0.0
      %341 = vmatprep.subr.mxu0 0.0
      %342 = vmatpush1.msra.mxu0 0.0
      %343 = vmatprep.subr.mxu0 0.0
      %344 = vmatpush1.msra.mxu0 0.0
      %345 = vmatprep.subr.mxu0 0.0
      %346 = vmatpush1.msra.mxu0 0.0
      %347 = vmatprep.subr.mxu0 0.0
      %348 = vmatpush1.msra.mxu0 0.0
      %349 = vmatprep.subr.mxu0 0.0
      %350 = vmatpush1.msra.mxu0 0.0
      %351 = vmatprep.subr.mxu0 0.0
      %352 = vmatpush1.msra.mxu0 0.0
      %353 = vmatprep.subr.mxu0 0.0
      %354 = vmatpush1.msra.mxu0 0.0
      %355 = vmatprep.subr.mxu0 0.0
      %356 = vmatpush1.msra.mxu0 0.0
      %357 = vmatprep.subr.mxu0 0.0
      %358 = vmatpush1.msra.mxu0 0.0
      %359 = vmatprep.subr.mxu0 0.0
      %360 = vmatpush1.msra.mxu0 0.0
      %361 = vmatprep.subr.mxu0 0.0
      %362 = vmatpush1.msra.mxu0 0.0
      %363 = vmatprep.subr.mxu0 0.0
      %364 = vmatpush1.msra.mxu0 0.0
      %365 = vmatprep.subr.mxu0 0.0
      %366 = vmatpush1.msra.mxu0 0.0
      %367 = vmatprep.subr.mxu0 0.0
      %368 = vmatpush1.msra.mxu0 0.0
      %369 = vmatprep.subr.mxu0 0.0
      %370 = vmatpush1.msra.mxu0 0.0
      %371 = vmatprep.subr.mxu0 0.0
      %372 = vmatpush1.msra.mxu0 0.0
      %373 = vmatprep.subr.mxu0 0.0
      %374 = vmatpush1.msra.mxu0 0.0
      %375 = vmatprep.subr.mxu0 0.0
      %376 = vmatpush1.msra.mxu0 0.0
      %377 = vmatprep.subr.mxu0 0.0
      %378 = vmatpush1.msra.mxu0 0.0
      %379 = vmatprep.subr.mxu0 0.0
      %380 = vmatpush1.msra.mxu0 0.0
      %381 = vmatprep.subr.mxu0 0.0
      %382 = vmatpush1.msra.mxu0 0.0
      %383 = vmatprep.mubr.f32.mxu0 0.0
      %384 = vmatmul.mubr.f32.gmra.mrb[0].mxu0 %v317
      %v385 = vpop.f32.mrb[0].mxu0
      %v386 = vadd.f32 %v295, %v385
      %v387 = vpop.f32.mrb[0].mxu0
      %388 = vdwg.mxu0
      %vm389 = vcmask 64512
      %v391 = vsel %vm389, %v386, 0
      %393 = vmatprep.subr.mxu0 0.0
      %394 = vmatpush1.msra.mxu0 %v296
      %395 = vmatprep.subr.mxu0 0.0
      %396 = vmatpush1.msra.mxu0 0.0
      %397 = vmatprep.subr.mxu0 0.0
      %398 = vmatpush1.msra.mxu0 0.0
      %399 = vmatprep.subr.mxu0 0.0
      %400 = vmatpush1.msra.mxu0 0.0
      %401 = vmatprep.subr.mxu0 0.0
      %402 = vmatpush1.msra.mxu0 0.0
      %403 = vmatprep.subr.mxu0 0.0
      %404 = vmatpush1.msra.mxu0 0.0
      %405 = vmatprep.subr.mxu0 0.0
      %406 = vmatpush1.msra.mxu0 0.0
      %407 = vmatprep.subr.mxu0 0.0
      %408 = vmatpush1.msra.mxu0 0.0
      %409 = vmatprep.subr.mxu0 0.0
      %410 = vmatpush1.msra.mxu0 0.0
      %411 = vmatprep.subr.mxu0 0.0
      %412 = vmatpush1.msra.mxu0 0.0
      %413 = vmatprep.subr.mxu0 0.0
      %414 = vmatpush1.msra.mxu0 0.0
      %415 = vmatprep.subr.mxu0 0.0
      %416 = vmatpush1.msra.mxu0 0.0
      %417 = vmatprep.subr.mxu0 0.0
      %418 = vmatpush1.msra.mxu0 0.0
      %419 = vmatprep.subr.mxu0 0.0
      %420 = vmatpush1.msra.mxu0 0.0
      %421 = vmatprep.subr.mxu0 0.0
      %422 = vmatpush1.msra.mxu0 0.0
      %423 = vmatprep.subr.mxu0 0.0
      %424 = vmatpush1.msra.mxu0 0.0
      %425 = vmatprep.subr.mxu0 0.0
      %426 = vmatpush1.msra.mxu0 0.0
      %427 = vmatprep.subr.mxu0 0.0
      %428 = vmatpush1.msra.mxu0 0.0
      %429 = vmatprep.subr.mxu0 0.0
      %430 = vmatpush1.msra.mxu0 0.0
      %431 = vmatprep.subr.mxu0 0.0
      %432 = vmatpush1.msra.mxu0 0.0
      %433 = vmatprep.subr.mxu0 0.0
      %434 = vmatpush1.msra.mxu0 0.0
      %435 = vmatprep.subr.mxu0 0.0
      %436 = vmatpush1.msra.mxu0 0.0
      %437 = vmatprep.subr.mxu0 0.0
      %438 = vmatpush1.msra.mxu0 0.0
      %439 = vmatprep.subr.mxu0 0.0
      %440 = vmatpush1.msra.mxu0 0.0
      %441 = vmatprep.subr.mxu0 0.0
      %442 = vmatpush1.msra.mxu0 0.0
      %443 = vmatprep.subr.mxu0 0.0
      %444 = vmatpush1.msra.mxu0 0.0
      %445 = vmatprep.subr.mxu0 0.0
      %446 = vmatpush1.msra.mxu0 0.0
      %447 = vmatprep.subr.mxu0 0.0
      %448 = vmatpush1.msra.mxu0 0.0
      %449 = vmatprep.subr.mxu0 0.0
      %450 = vmatpush1.msra.mxu0 0.0
      %451 = vmatprep.subr.mxu0 0.0
      %452 = vmatpush1.msra.mxu0 0.0
      %453 = vmatprep.subr.mxu0 0.0
      %454 = vmatpush1.msra.mxu0 0.0
      %455 = vmatprep.subr.mxu0 0.0
      %456 = vmatpush1.msra.mxu0 0.0
      %457 = vmatprep.mubr.f32.mxu0 0.0
      %458 = vmatmul.mubr.f32.gmra.mrb[0].mxu0 %v391
      %v459 = vpop.f32.mrb[0].mxu0
      %v460 = vadd.f32 0.0, %v459
      %v461 = vpop.f32.mrb[0].mxu0
      %462 = vdwg.mxu0
      %v463 = vsub.f32 %v386, %v460
      %v464 = vmul.f32 %v463, %v463
      %v466 = vsel %vm389, %v464, 0
      %468 = vmatprep.subr.mxu0 0.0
      %469 = vmatpush1.msra.mxu0 %v296
      %470 = vmatprep.subr.mxu0 0.0
      %471 = vmatpush1.msra.mxu0 0.0
      %472 = vmatprep.subr.mxu0 0.0
      %473 = vmatpush1.msra.mxu0 0.0
      %474 = vmatprep.subr.mxu0 0.0
      %475 = vmatpush1.msra.mxu0 0.0
      %476 = vmatprep.subr.mxu0 0.0
      %477 = vmatpush1.msra.mxu0 0.0
      %478 = vmatprep.subr.mxu0 0.0
      %479 = vmatpush1.msra.mxu0 0.0
      %480 = vmatprep.subr.mxu0 0.0
      %481 = vmatpush1.msra.mxu0 0.0
      %482 = vmatprep.subr.mxu0 0.0
      %483 = vmatpush1.msra.mxu0 0.0
      %484 = vmatprep.subr.mxu0 0.0
      %485 = vmatpush1.msra.mxu0 0.0
      %486 = vmatprep.subr.mxu0 0.0
      %487 = vmatpush1.msra.mxu0 0.0
      %488 = vmatprep.subr.mxu0 0.0
      %489 = vmatpush1.msra.mxu0 0.0
      %490 = vmatprep.subr.mxu0 0.0
      %491 = vmatpush1.msra.mxu0 0.0
      %492 = vmatprep.subr.mxu0 0.0
      %493 = vmatpush1.msra.mxu0 0.0
      %494 = vmatprep.subr.mxu0 0.0
      %495 = vmatpush1.msra.mxu0 0.0
      %496 = vmatprep.subr.mxu0 0.0
      %497 = vmatpush1.msra.mxu0 0.0
      %498 = vmatprep.subr.mxu0 0.0
      %499 = vmatpush1.msra.mxu0 0.0
      %500 = vmatprep.subr.mxu0 0.0
      %501 = vmatpush1.msra.mxu0 0.0
      %502 = vmatprep.subr.mxu0 0.0
      %503 = vmatpush1.msra.mxu0 0.0
      %504 = vmatprep.subr.mxu0 0.0
      %505 = vmatpush1.msra.mxu0 0.0
      %506 = vmatprep.subr.mxu0 0.0
      %507 = vmatpush1.msra.mxu0 0.0
      %508 = vmatprep.subr.mxu0 0.0
      %509 = vmatpush1.msra.mxu0 0.0
      %510 = vmatprep.subr.mxu0 0.0
      %511 = vmatpush1.msra.mxu0 0.0
      %512 = vmatprep.subr.mxu0 0.0
      %513 = vmatpush1.msra.mxu0 0.0
      %514 = vmatprep.subr.mxu0 0.0
      %515 = vmatpush1.msra.mxu0 0.0
      %516 = vmatprep.subr.mxu0 0.0
      %517 = vmatpush1.msra.mxu0 0.0
      %518 = vmatprep.subr.mxu0 0.0
      %519 = vmatpush1.msra.mxu0 0.0
      %520 = vmatprep.subr.mxu0 0.0
      %521 = vmatpush1.msra.mxu0 0.0
      %522 = vmatprep.subr.mxu0 0.0
      %523 = vmatpush1.msra.mxu0 0.0
      %524 = vmatprep.subr.mxu0 0.0
      %525 = vmatpush1.msra.mxu0 0.0
      %526 = vmatprep.subr.mxu0 0.0
      %527 = vmatpush1.msra.mxu0 0.0
      %528 = vmatprep.subr.mxu0 0.0
      %529 = vmatpush1.msra.mxu0 0.0
      %530 = vmatprep.subr.mxu0 0.0
      %531 = vmatpush1.msra.mxu0 0.0
      %532 = vmatprep.mubr.f32.mxu0 0.0
      %533 = vmatmul.mubr.f32.gmra.mrb[0].mxu0 %v466
      %v534 = vpop.f32.mrb[0].mxu0
      %v535 = vadd.f32 1e-05, %v534
      %v536 = vpop.f32.mrb[0].mxu0
      %537 = vdwg.mxu0
      %v538 = vrsqrt.pop %v535
      %v539 = vmul.f32 %v463, %v538
      %v541 = vrot.slane %v295, 1
      %v543 = vmul.f32 %v539, %v541
      %v544 = vrot.slane %v295, 2
      %v546 = vadd.f32 %v543, %v544
      %v547 = vadd.f32 %v546, 3.0
      %v548 = vmax.f32 %v547, 0.0
      %v549 = vmin.f32 %v548, 6.0
      %v550 = vmul.f32 %v546, %v549
      %v551 = vmul.f32 %v550, 0.16666667
      %v553 = vsel %vm389, %v551, 0
      %555 = vmatprep.subr.mxu0 0.0
      %556 = vmatpush1.msra.mxu0 %v297
      %557 = vmatprep.subr.mxu0 0.0
      %558 = vmatpush1.msra.mxu0 0.0
      %559 = vmatprep.subr.mxu0 0.0
      %560 = vmatpush1.msra.mxu0 0.0
      %561 = vmatprep.subr.mxu0 0.0
      %562 = vmatpush1.msra.mxu0 0.0
      %563 = vmatprep.subr.mxu0 0.0
      %564 = vmatpush1.msra.mxu0 0.0
      %565 = vmatprep.subr.mxu0 0.0
      %566 = vmatpush1.msra.mxu0 0.0
      %567 = vmatprep.subr.mxu0 0.0
      %568 = vmatpush1.msra.mxu0 0.0
      %569 = vmatprep.subr.mxu0 0.0
      %570 = vmatpush1.msra.mxu0 0.0
      %571 = vmatprep.subr.mxu0 0.0
      %572 = vmatpush1.msra.mxu0 0.0
      %573 = vmatprep.subr.mxu0 0.0
      %574 = vmatpush1.msra.mxu0 0.0
      %575 = vmatprep.subr.mxu0 0.0
      %576 = vmatpush1.msra.mxu0 0.0
      %577 = vmatprep.subr.mxu0 0.0
      %578 = vmatpush1.msra.mxu0 0.0
      %579 = vmatprep.subr.mxu0 0.0
      %580 = vmatpush1.msra.mxu0 0.0
      %581 = vmatprep.subr.mxu0 0.0
      %582 = vmatpush1.msra.mxu0 0.0
      %583 = vmatprep.subr.mxu0 0.0
      %584 = vmatpush1.msra.mxu0 0.0
      %585 = vmatprep.subr.mxu0 0.0
      %586 = vmatpush1.msra.mxu0 0.0
      %587 = vmatprep.subr.mxu0 0.0
      %588 = vmatpush1.msra.mxu0 0.0
      %589 = vmatprep.subr.mxu0 0.0
      %590 = vmatpush1.msra.mxu0 0.0
      %591 = vmatprep.subr.mxu0 0.0
      %592 = vmatpush1.msra.mxu0 0.0
      %593 = vmatprep.subr.mxu0 0.0
      %594 = vmatpush1.msra.mxu0 0.0
      %595 = vmatprep.subr.mxu0 0.0
      %596 = vmatpush1.msra.mxu0 0.0
      %597 = vmatprep.subr.mxu0 0.0
      %598 = vmatpush1.msra.mxu0 0.0
      %599 = vmatprep.subr.mxu0 0.0
      %600 = vmatpush1.msra.mxu0 0.0
      %601 = vmatprep.subr.mxu0 0.0
      %602 = vmatpush1.msra.mxu0 0.0
      %603 = vmatprep.subr.mxu0 0.0
      %604 = vmatpush1.msra.mxu0 0.0
      %605 = vmatprep.subr.mxu0 0.0
      %606 = vmatpush1.msra.mxu0 0.0
      %607 = vmatprep.subr.mxu0 0.0
      %608 = vmatpush1.msra.mxu0 0.0
      %609 = vmatprep.subr.mxu0 0.0
      %610 = vmatpush1.msra.mxu0 0.0
      %611 = vmatprep.subr.mxu0 0.0
      %612 = vmatpush1.msra.mxu0 0.0
      %613 = vmatprep.subr.mxu0 0.0
      %614 = vmatpush1.msra.mxu0 0.0
      %615 = vmatprep.subr.mxu0 0.0
      %616 = vmatpush1.msra.mxu0 0.0
      %617 = vmatprep.subr.mxu0 0.0
      %618 = vmatpush1.msra.mxu0 0.0
      %619 = vmatprep.mubr.f32.mxu0 0.0
      %620 = vmatmul.mubr.f32.gmra.mrb[0].mxu0 %v553
      %v621 = vpop.f32.mrb[0].mxu0
      %v622 = vadd.f32 %v298, %v621
      %v623 = vpop.f32.mrb[0].mxu0
      %624 = vdwg.mxu0
      %v626 = vsel %vm316, %v622, 0
      %628 = vmatprep.subr.mxu0 0.0
      %629 = vmatpush1.msra.mxu0 %v299
      %630 = vmatprep.subr.mxu0 0.0
      %631 = vmatpush1.msra.mxu0 %v300
      %632 = vmatprep.subr.mxu0 0.0
      %633 = vmatpush1.msra.mxu0 0.0
      %634 = vmatprep.subr.mxu0 0.0
      %635 = vmatpush1.msra.mxu0 0.0
      %636 = vmatprep.subr.mxu0 0.0
      %637 = vmatpush1.msra.mxu0 0.0
      %638 = vmatprep.subr.mxu0 0.0
      %639 = vmatpush1.msra.mxu0 0.0
      %640 = vmatprep.subr.mxu0 0.0
      %641 = vmatpush1.msra.mxu0 0.0
      %642 = vmatprep.subr.mxu0 0.0
      %643 = vmatpush1.msra.mxu0 0.0
      %644 = vmatprep.subr.mxu0 0.0
      %645 = vmatpush1.msra.mxu0 0.0
      %646 = vmatprep.subr.mxu0 0.0
      %647 = vmatpush1.msra.mxu0 0.0
      %648 = vmatprep.subr.mxu0 0.0
      %649 = vmatpush1.msra.mxu0 0.0
      %650 = vmatprep.subr.mxu0 0.0
      %651 = vmatpush1.msra.mxu0 0.0
      %652 = vmatprep.subr.mxu0 0.0
      %653 = vmatpush1.msra.mxu0 0.0
      %654 = vmatprep.subr.mxu0 0.0
      %655 = vmatpush1.msra.mxu0 0.0
      %656 = vmatprep.subr.mxu0 0.0
      %657 = vmatpush1.msra.mxu0 0.0
      %658 = vmatprep.subr.mxu0 0.0
      %659 = vmatpush1.msra.mxu0 0.0
      %660 = vmatprep.subr.mxu0 0.0
      %661 = vmatpush1.msra.mxu0 0.0
      %662 = vmatprep.subr.mxu0 0.0
      %663 = vmatpush1.msra.mxu0 0.0
      %664 = vmatprep.subr.mxu0 0.0
      %665 = vmatpush1.msra.mxu0 0.0
      %666 = vmatprep.subr.mxu0 0.0
      %667 = vmatpush1.msra.mxu0 0.0
      %668 = vmatprep.subr.mxu0 0.0
      %669 = vmatpush1.msra.mxu0 0.0
      %670 = vmatprep.subr.mxu0 0.0
      %671 = vmatpush1.msra.mxu0 0.0
      %672 = vmatprep.subr.mxu0 0.0
      %673 = vmatpush1.msra.mxu0 0.0
      %674 = vmatprep.subr.mxu0 0.0
      %675 = vmatpush1.msra.mxu0 0.0
      %676 = vmatprep.subr.mxu0 0.0
      %677 = vmatpush1.msra.mxu0 0.0
      %678 = vmatprep.subr.mxu0 0.0
      %679 = vmatpush1.msra.mxu0 0.0
      %680 = vmatprep.subr.mxu0 0.0
      %681 = vmatpush1.msra.mxu0 0.0
      %682 = vmatprep.subr.mxu0 0.0
      %683 = vmatpush1.msra.mxu0 0.0
      %684 = vmatprep.subr.mxu0 0.0
      %685 = vmatpush1.msra.mxu0 0.0
      %686 = vmatprep.subr.mxu0 0.0
      %687 = vmatpush1.msra.mxu0 0.0
      %688 = vmatprep.subr.mxu0 0.0
      %689 = vmatpush1.msra.mxu0 0.0
      %690 = vmatprep.subr.mxu0 0.0
      %691 = vmatpush1.msra.mxu0 0.0
      %692 = vmatprep.mubr.f32.mxu0 0.0
      %693 = vmatmul.mubr.f32.gmra.mrb[0].mxu0 %v626
      %v694 = vpop.f32.mrb[0].mxu0
      %v695 = vadd.f32 0.0, %v694
      %v696 = vpop.f32.mrb[0].mxu0
      %697 = vdwg.mxu0
      %v698 = vsub.f32 %v622, %v695
      %v699 = vmul.f32 %v698, %v698
      %v701 = vsel %vm316, %v699, 0
      %703 = vmatprep.subr.mxu0 0.0
      %704 = vmatpush1.msra.mxu0 %v299
      %705 = vmatprep.subr.mxu0 0.0
      %706 = vmatpush1.msra.mxu0 %v300
      %707 = vmatprep.subr.mxu0 0.0
      %708 = vmatpush1.msra.mxu0 0.0
      %709 = vmatprep.subr.mxu0 0.0
      %710 = vmatpush1.msra.mxu0 0.0
      %711 = vmatprep.subr.mxu0 0.0
      %712 = vmatpush1.msra.mxu0 0.0
      %713 = vmatprep.subr.mxu0 0.0
      %714 = vmatpush1.msra.mxu0 0.0
      %715 = vmatprep.subr.mxu0 0.0
      %716 = vmatpush1.msra.mxu0 0.0
      %717 = vmatprep.subr.mxu0 0.0
      %718 = vmatpush1.msra.mxu0 0.0
      %719 = vmatprep.subr.mxu0 0.0
      %720 = vmatpush1.msra.mxu0 0.0
      %721 = vmatprep.subr.mxu0 0.0
      %722 = vmatpush1.msra.mxu0 0.0
      %723 = vmatprep.subr.mxu0 0.0
      %724 = vmatpush1.msra.mxu0 0.0
      %725 = vmatprep.subr.mxu0 0.0
      %726 = vmatpush1.msra.mxu0 0.0
      %727 = vmatprep.subr.mxu0 0.0
      %728 = vmatpush1.msra.mxu0 0.0
      %729 = vmatprep.subr.mxu0 0.0
      %730 = vmatpush1.msra.mxu0 0.0
      %731 = vmatprep.subr.mxu0 0.0
      %732 = vmatpush1.msra.mxu0 0.0
      %733 = vmatprep.subr.mxu0 0.0
      %734 = vmatpush1.msra.mxu0 0.0
      %735 = vmatprep.subr.mxu0 0.0
      %736 = vmatpush1.msra.mxu0 0.0
      %737 = vmatprep.subr.mxu0 0.0
      %738 = vmatpush1.msra.mxu0 0.0
      %739 = vmatprep.subr.mxu0 0.0
      %740 = vmatpush1.msra.mxu0 0.0
      %741 = vmatprep.subr.mxu0 0.0
      %742 = vmatpush1.msra.mxu0 0.0
      %743 = vmatprep.subr.mxu0 0.0
      %744 = vmatpush1.msra.mxu0 0.0
      %745 = vmatprep.subr.mxu0 0.0
      %746 = vmatpush1.msra.mxu0 0.0
      %747 = vmatprep.subr.mxu0 0.0
      %748 = vmatpush1.msra.mxu0 0.0
      %749 = vmatprep.subr.mxu0 0.0
      %750 = vmatpush1.msra.mxu0 0.0
      %751 = vmatprep.subr.mxu0 0.0
      %752 = vmatpush1.msra.mxu0 0.0
      %753 = vmatprep.subr.mxu0 0.0
      %754 = vmatpush1.msra.mxu0 0.0
      %755 = vmatprep.subr.mxu0 0.0
      %756 = vmatpush1.msra.mxu0 0.0
      %757 = vmatprep.subr.mxu0 0.0
      %758 = vmatpush1.msra.mxu0 0.0
      %759 = vmatprep.subr.mxu0 0.0
      %760 = vmatpush1.msra.mxu0 0.0
      %761 = vmatprep.subr.mxu0 0.0
      %762 = vmatpush1.msra.mxu0 0.0
      %763 = vmatprep.subr.mxu0 0.0
      %764 = vmatpush1.msra.mxu0 0.0
      %765 = vmatprep.subr.mxu0 0.0
      %766 = vmatpush1.msra.mxu0 0.0
      %767 = vmatprep.mubr.f32.mxu0 0.0
      %768 = vmatmul.mubr.f32.gmra.mrb[0].mxu0 %v701
      %v769 = vpop.f32.mrb[0].mxu0
      %v770 = vadd.f32 1e-05, %v769
      %v771 = vpop.f32.mrb[0].mxu0
      %772 = vdwg.mxu0
      %v773 = vrsqrt.pop %v770
      %v774 = vmul.f32 %v698, %v773
      %v776 = vrot.slane %v298, 1
      %v778 = vmul.f32 %v774, %v776
      %v779 = vrot.slane %v298, 2
      %v781 = vadd.f32 %v778, %v779
      %v782 = vxor.u32 %v781, 2147483648
      %v783 = vmul.f32 %v782, 1.442695
      %v784 = vpow.pop %v783
      %v785 = vadd.f32 %v784, 1.0
      %v786 = vrcp.pop %v785
      %v787 = vmul.f32 1.0, %v786
      %v788 = vlaneseq
      %v789 = vshrl.u32 %v788, 7
      %v790 = vsub.s32 0, %v789
      %v791 = vrot.slane %v787, %v790
      %793 = vbcast.lane.b32.xlu0 %v791, 256
      %v794 = vpop.permute.xlu0 %793
      %s796 = sor.u32 256, 8
      %797 = vbcast.lane.b32.xlu0 %v791, %s796
      %v798 = vpop.permute.xlu0 %797
      %v799 = vmul.f32 %v279, %v794
      %v800 = vmul.f32 %v280, %v794
      %v801 = vmul.f32 %v281, %v798
      %v802 = vmul.f32 %v282, %v798
      %803 = vst [vmem:[%s278] sm:$0xff] %v799
      %804 = vst [vmem:[%s278 + $0x8] sm:$0xff] %v800
      %805 = vst [vmem:[%s278 + $0x10] sm:$0xff] %v801
      %806 = vst [vmem:[%s278 + $0x18] sm:$0xff] %v802
      %p807 = scmp.lt.s32.totalorder %s18, 1
      %s808 = scalar_select %p807, %s18, 1
      %s809 = smul.addr %s808, 4
      %s810 = smul.addr %s809, 8
      %s811 = scalar_lea.vmem %s7, %s810
      // Predicated region
      $region49: #{_scse_forward_impl.1} parent=47 // pred_check
        %p812 = pneg %p188
      $region50: #{_scse_forward_impl.1} parent=47 // pred_check_branch
        %814 = sbr.rel (%p812) target = $region52
      $region51: #{_scse_forward_impl.1} parent=47 // pred_region
        _
      $region52: #{_scse_forward_impl.1} parent=47 // pred_fallthru
        _
    $region48: #{_scse_forward_impl.1} parent=5 // pred_fallthru
      _
    %p815 = scmp.le.s32.totalorder 2, %s13
    // Predicated region
    $region53: #{_scse_forward_impl.1} parent=5 // pred_check
      %p816 = pneg %p815
    $region54: #{_scse_forward_impl.1} parent=5 // pred_check_branch
      %818 = sbr.rel (%p816) target = $region56
    $region55: #{_scse_forward_impl.1} parent=5 // pred_region
      %s819 = ssub.s32 %s13, 2
      // Predicated region
      $region57: #{_scse_forward_impl.1} parent=55 // pred_check
        %p820 = pneg %p194
      $region58: #{_scse_forward_impl.1} parent=55 // pred_check_branch
        %822 = sbr.rel (%p820) target = $region60
      $region59: #{_scse_forward_impl.1} parent=55 // pred_region
        %p823 = scmp.lt.s32.totalorder %s19, 1
        %s824 = scalar_select %p823, %s19, 1
        %s825 = smul.addr %s824, 4
        %s826 = smul.addr %s825, 8
        %s827 = scalar_lea.vmem %s7, %s826
      $region60: #{_scse_forward_impl.1} parent=55 // pred_fallthru
        _
    $region56: #{_scse_forward_impl.1} parent=5 // pred_fallthru
      _
  $region6: #{_scse_forward_impl.1} parent=0 // loop_footer
    %s17 = sadd.s32 1, %s13
  $region7: #{_scse_forward_impl.1} parent=0 // loop_footer_branch
    %12 = sbr.rel target = $region3
  $region8: #{_scse_forward_impl.1} parent=0 // loop_exit
    _

</llo_original>
